<compile_context>
chip_gen: v7x
topology: tpu7x:2x2x1
jax: 0.10.0
libtpu: 0.0.40
codegen_flags: <defaults>
</compile_context>

<pallas_src>
import functools

import numpy as np

import jax
import jax.numpy as jnp
from jax.experimental import pallas as pl
from jax.experimental.pallas import tpu as pltpu


_TAPS = tuple((dh, dw) for dh in (-1, 0, 1) for dw in (-1, 0, 1))
_LEAKY_SLOPE = 0.2


# ---------------------------------------------------------------------------
# Device-dependent perf flags (both settings are always numerically correct)
# ---------------------------------------------------------------------------

@functools.cache
def _device_kind() -> str:
    try:
        return jax.devices()[0].device_kind.lower()
    except Exception:                     # pragma: no cover - safe fallback
        return ""


def _default_fold_batch() -> bool:
    # Single-TC chips (v5e/v6e): fold batch into the lane axis -> half the serial
    # grid steps and 2x matmul N.  v7x has 2 TCs -> keep B as a parallel grid axis.
    return "v7" not in _device_kind()


def _default_act_dtype():
    # bf16 transcendentals only where the EUP supports them (v6e / v7x).
    k = _device_kind()
    return jnp.bfloat16 if ("v6" in k or "v7" in k) else jnp.float32


# ---------------------------------------------------------------------------
# pltpu.roll rotation convention, resolved once (outside any kernel trace).
# ---------------------------------------------------------------------------

@functools.cache
def _roll_matches_jnp() -> bool:
    def kern(x_ref, o_ref):
        o_ref[...] = pltpu.roll(x_ref[...], shift=3, axis=1)

    x = jnp.arange(8 * 128, dtype=jnp.float32).reshape(8, 128)
    y = pl.pallas_call(
        kern, out_shape=jax.ShapeDtypeStruct((8, 128), jnp.float32))(x)
    return bool(jnp.array_equal(y, jnp.roll(x, 3, axis=1)))


def _shift_source(img, s, length):
    """Returns y with y[:, p] = img[:, (p + s) % length] (static integer s)."""
    if s == 0:
        return img
    shift = (-s) % length if _roll_matches_jnp() else s % length
    return pltpu.roll(img, shift=shift, axis=1)


# ---------------------------------------------------------------------------
# Pallas kernels
# ---------------------------------------------------------------------------

def _build_taps(img, cin, m_ref, taps_sc, img_w, length):
    """Writes the 9-tap im2col slab of `img` (cin, L) into the bf16 VMEM scratch
    `taps_sc` (9*cin, L).  Out-of-image taps are zeroed by the precomputed masks,
    which also makes lane-wraps across folded batch / map boundaries harmless."""
    for ti, (dh, dw) in enumerate(_TAPS):
        shifted = _shift_source(img, dh * img_w + dw, length)
        if (dh, dw) != (0, 0):
            shifted = shifted * m_ref[ti]
        taps_sc[ti * cin:(ti + 1) * cin, :] = shifted.astype(taps_sc.dtype)


def _xgates_kernel(x_ref, wx_ref, b_ref, m_ref, o_ref, taps_sc,
                   *, cin, img_w, L):
    """Batched input-path gate conv: xg = W_x @ im2col(x) + b for a chunk of
    feature maps folded into the lane axis."""
    _build_taps(x_ref[...], cin, m_ref, taps_sc, img_w, L)
    o_ref[...] = jnp.dot(wx_ref[...], taps_sc[...],
                         preferred_element_type=jnp.float32) + b_ref[...]


def _convlstm_stage_kernel(*refs, hid, img_w, L, has_proj, act_dtype):
    """One whole forecaster stage, fused: peephole-ConvLSTM recurrence (W_h path
    only; x-gates precomputed) + subnet 3x3 conv + LeakyReLU (+ optional 1x1
    projection) epilogue.  grid = (nb, T); h/c live in VMEM scratch for the whole
    sequence, all weights / biases / masks are resident (constant index_map)."""
    if has_proj:
        (xg_ref, h0_ref, c0_ref, wh_ref, peep_ref, w1_ref, b1_ref,
         w2_ref, b2_ref, m_ref, y_ref, h_sc, c_sc, taps_sc) = refs
    else:
        (xg_ref, h0_ref, c0_ref, wh_ref, peep_ref, w1_ref, b1_ref,
         m_ref, y_ref, h_sc, c_sc, taps_sc) = refs

    t = pl.program_id(1)

    @pl.when(t == 0)
    def _load_initial_state():
        h_sc[...] = h0_ref[0]
        c_sc[...] = c0_ref[0]

    # ---- recurrence: gates = W_h @ im2col(h_{t-1}) + (x-gates + bias) ----------
    _build_taps(h_sc[...], hid, m_ref, taps_sc, img_w, L)
    gates = jnp.dot(wh_ref[...], taps_sc[...],
                    preferred_element_type=jnp.float32) + xg_ref[0, 0]

    def squash(fn, pre):
        return fn(pre.astype(act_dtype)).astype(jnp.float32)

    # chunk order matches torch.chunk(conv_out, 4, dim=1): i, f, g, o
    c_prev = c_sc[...]
    i_g = squash(jax.nn.sigmoid, gates[0 * hid:1 * hid] + peep_ref[0] * c_prev)
    f_g = squash(jax.nn.sigmoid, gates[1 * hid:2 * hid] + peep_ref[1] * c_prev)
    g_g = squash(jnp.tanh, gates[2 * hid:3 * hid])
    c_new = f_g * c_prev + i_g * g_g
    o_g = squash(jax.nn.sigmoid, gates[3 * hid:4 * hid] + peep_ref[2] * c_new)
    h_new = o_g * squash(jnp.tanh, c_new)

    h_sc[...] = h_new
    c_sc[...] = c_new

    # ---- fused subnet epilogue: 3x3 conv + LeakyReLU (+ optional 1x1 proj) -----
    _build_taps(h_new, hid, m_ref, taps_sc, img_w, L)
    y = jnp.dot(w1_ref[...], taps_sc[...],
                preferred_element_type=jnp.float32) + b1_ref[...]
    y = jnp.where(y > 0, y, _LEAKY_SLOPE * y)          # LeakyReLU(0.2)
    if has_proj:
        y = jnp.dot(w2_ref[...], y.astype(w2_ref.dtype),
                    preferred_element_type=jnp.float32) + b2_ref[...]
    y_ref[...] = y.reshape(1, 1, *y.shape)


# ---------------------------------------------------------------------------
# Pallas wrappers
# ---------------------------------------------------------------------------

def _largest_divisor_leq(n, cap):
    for g in range(min(n, cap), 0, -1):
        if n % g == 0:
            return g
    return 1


def compute_xgates(rnn, x, masks_hw, img_w, hw):
    """Precompute the input-path gate pre-activations W_x @ im2col(x) + b for all
    (b, t) feature maps at once (maps folded into the lane axis).

    x: (B, S, cin, HW) -> returns (4*hid, S, B, HW) float32."""
    B, S, cin, _ = x.shape
    hid = rnn["hid"]
    n_maps = B * S
    # lane order: (t, b, pixel); each map is a contiguous HW-lane block
    xf = jnp.transpose(x, (2, 1, 0, 3)).reshape(cin, n_maps * hw)
    group = _largest_divisor_leq(n_maps, max(1, 4096 // hw))
    chunk = group * hw
    grid = (n_maps * hw) // chunk
    masks = jnp.tile(masks_hw, (1, 1, group))
    bias = jnp.broadcast_to(rnn["b_vec"].reshape(4 * hid, 1), (4 * hid, chunk))
    kern = functools.partial(_xgates_kernel, cin=cin, img_w=img_w, L=chunk)
    out = pl.pallas_call(
        kern,
        out_shape=jax.ShapeDtypeStruct((4 * hid, n_maps * hw), jnp.float32),
        grid=(grid,),
        in_specs=[pl.BlockSpec((cin, chunk), lambda n: (0, n)),
                  pl.BlockSpec((4 * hid, 9 * cin), lambda n: (0, 0)),
                  pl.BlockSpec((4 * hid, chunk), lambda n: (0, 0)),
                  pl.BlockSpec((9, 1, chunk), lambda n: (0, 0, 0))],
        out_specs=pl.BlockSpec((4 * hid, chunk), lambda n: (0, n)),
        scratch_shapes=[pltpu.VMEM((9 * cin, chunk), jnp.bfloat16)],
        compiler_params=pltpu.CompilerParams(
            dimension_semantics=("parallel",)),
    )(xf, rnn["wx_t"], bias, masks)
    return out.reshape(4 * hid, S, B, hw)


def _run_stage(rnn, subnet, xg, xg_per_step, h0, c0, peep, masks, seq_len,
               img_w, L, nb, act_dtype):
    """One forecaster stage (ConvLSTM over the whole sequence + fused subnet) as a
    single pallas_call.  Returns (nb, seq_len, cout, L)."""
    hid = rnn["hid"]
    conv1 = subnet[0]
    proj = subnet[1] if len(subnet) == 2 else None
    has_proj = proj is not None
    cmid = conv1["wt"].shape[0]
    cout = proj["wt"].shape[0] if has_proj else cmid

    b1 = jnp.broadcast_to(conv1["b_vec"].reshape(cmid, 1), (cmid, L))
    xg_idx = ((lambda b, t: (b, t, 0, 0)) if xg_per_step
              else (lambda b, t: (0, 0, 0, 0)))

    in_specs = [
        pl.BlockSpec((1, 1, 4 * hid, L), xg_idx),                  # x-gates (+bias)
        pl.BlockSpec((1, hid, L), lambda b, t: (b, 0, 0)),         # h0
        pl.BlockSpec((1, hid, L), lambda b, t: (b, 0, 0)),         # c0
        pl.BlockSpec((4 * hid, 9 * hid), lambda b, t: (0, 0)),     # W_h (bf16)
        pl.BlockSpec((3, hid, L), lambda b, t: (0, 0, 0)),         # peephole
        pl.BlockSpec((cmid, 9 * hid), lambda b, t: (0, 0)),        # subnet conv (bf16)
        pl.BlockSpec((cmid, L), lambda b, t: (0, 0)),              # subnet bias
    ]
    args = [xg, h0, c0, rnn["wh_t"], peep, conv1["wt"], b1]
    if has_proj:
        b2 = jnp.broadcast_to(proj["b_vec"].reshape(cout, 1), (cout, L))
        in_specs += [pl.BlockSpec((cout, cmid), lambda b, t: (0, 0)),
                     pl.BlockSpec((cout, L), lambda b, t: (0, 0))]
        args += [proj["wt"], b2]
    in_specs += [pl.BlockSpec((9, 1, L), lambda b, t: (0, 0, 0))]  # tap masks
    args += [masks]

    kern = functools.partial(_convlstm_stage_kernel, hid=hid, img_w=img_w, L=L,
                             has_proj=has_proj, act_dtype=act_dtype)
    return pl.pallas_call(
        kern,
        out_shape=jax.ShapeDtypeStruct((nb, seq_len, cout, L), jnp.float32),
        grid=(nb, seq_len),
        in_specs=in_specs,
        out_specs=pl.BlockSpec((1, 1, cout, L), lambda b, t: (b, t, 0, 0)),
        scratch_shapes=[pltpu.VMEM((hid, L), jnp.float32),        # h state
                        pltpu.VMEM((hid, L), jnp.float32),        # c state
                        pltpu.VMEM((9 * hid, L), jnp.bfloat16)],  # im2col slab
        compiler_params=pltpu.CompilerParams(
            dimension_semantics=("parallel", "arbitrary")),
    )(*args)


# ---------------------------------------------------------------------------
# Forecaster forward (matches the PyTorch control flow)
# ---------------------------------------------------------------------------

def forecaster_forward(params, hidden_states, seq_len, img_hw, *,
                       fold_batch, act_dtype):
    """Mirrors Forecaster.forward(hidden_states): deepest stage first with
    inputs=None, rnn(seq_len=10) -> subnet per stage, output (B, S, C, H, W)."""
    _roll_matches_jnp()                      # resolve roll convention up front
    img_h, img_w = img_hw
    hw = img_h * img_w
    stages = params["stages"]
    masks_hw = params["tap_masks"]           # (9, 1, HW)
    B = hidden_states[0][0].shape[0]
    nb, L = (1, B * hw) if fold_batch else (B, hw)
    rep = L // hw
    masks = masks_hw if rep == 1 else jnp.tile(masks_hw, (1, 1, rep))

    def fold_state(s):                       # (B, hid, H, W) -> (nb, hid, L)
        s = s.reshape(B, s.shape[1], hw)
        if not fold_batch:
            return s
        return jnp.transpose(s, (1, 0, 2)).reshape(1, s.shape[1], B * hw)

    x = None                                 # previous stage output (B, S, c, HW)
    cout = None
    for idx in reversed(range(len(stages))):
        st = stages[idx]
        rnn = st["rnn"]
        hid = rnn["hid"]
        h0 = fold_state(hidden_states[idx][0])
        c0 = fold_state(hidden_states[idx][1])

        if x is None:
            # deepest stage: rnn(None, state) -> zero input; x-gates reduce to bias
            xg = jnp.broadcast_to(rnn["b_vec"].reshape(1, 1, 4 * hid, 1),
                                  (1, 1, 4 * hid, L)).astype(jnp.float32)
            xg_per_step = False
        else:
            xg4 = compute_xgates(rnn, x, masks_hw, img_w, hw)  # (4h, S, B, HW)
            if fold_batch:
                xg = jnp.transpose(xg4, (1, 0, 2, 3)).reshape(
                    1, seq_len, 4 * hid, L)
            else:
                xg = jnp.transpose(xg4, (2, 1, 0, 3))          # (B, S, 4h, HW)
            xg_per_step = True

        peep = rnn["peep"] if rep == 1 else jnp.tile(rnn["peep"], (1, 1, rep))
        y = _run_stage(rnn, st["subnet"], xg, xg_per_step, h0, c0, peep, masks,
                       seq_len, img_w, L, nb, act_dtype)       # (nb, S, cout, L)
        cout = y.shape[2]
        if fold_batch:
            x = jnp.transpose(y.reshape(seq_len, cout, B, hw), (2, 0, 1, 3))
        else:
            x = y
    # Internally everything is batch-major (B, S, C, H*W), so PyTorch's final
    # permute(1, 0, 2, 3, 4) of the (S, B, C, H, W) stack is already done.
    return x.reshape(B, seq_len, cout, img_h, img_w)


# ---------------------------------------------------------------------------
# Deterministic parameter construction
# ---------------------------------------------------------------------------

def _make_tap_masks(img_h, img_w):
    hw = img_h * img_w
    p = np.arange(hw)
    hh, ww = p // img_w, p % img_w
    masks = np.zeros((9, 1, hw), np.float32)
    for ti, (dh, dw) in enumerate(_TAPS):
        valid = ((hh + dh >= 0) & (hh + dh < img_h) &
                 (ww + dw >= 0) & (ww + dw < img_w))
        masks[ti, 0] = valid.astype(np.float32)
    return jnp.asarray(masks)


def _round_bf16(a):
    # weights shared bit-exactly between the bf16 kernel path and f32 reference
    return a.astype(jnp.bfloat16).astype(jnp.float32)


def _init_conv(key, kh, kw, cin, cout, leaky):
    scale = 1.0 / float(kh * kw * cin) ** 0.5
    k_w, k_b = jax.random.split(key)
    w = _round_bf16(scale * jax.random.normal(k_w, (kh, kw, cin, cout),
                                              jnp.float32))
    b = scale * jax.random.normal(k_b, (cout,), jnp.float32)
    return {"w": w, "b_vec": b, "leaky": leaky,
            # MXU-ready bf16 layout, built once at init and resident in kernels
            "wt": w.reshape(kh * kw * cin, cout).T.astype(jnp.bfloat16)}


def _init_convlstm(key, in_ch, hid, hw):
    k_x, k_h, k_b, k_p = jax.random.split(key, 4)
    scale = 1.0 / float(9 * (in_ch + hid)) ** 0.5
    wx = _round_bf16(scale * jax.random.normal(k_x, (3, 3, in_ch, 4 * hid),
                                               jnp.float32))
    wh = _round_bf16(scale * jax.random.normal(k_h, (3, 3, hid, 4 * hid),
                                               jnp.float32))
    b = scale * jax.random.normal(k_b, (4 * hid,), jnp.float32)
    peep = 0.1 * jax.random.normal(k_p, (3, hid, hw), jnp.float32)
    return {"wx": wx, "wh": wh, "b_vec": b, "peep": peep, "hid": hid,
            "wx_t": wx.reshape(9 * in_ch, 4 * hid).T.astype(jnp.bfloat16),
            "wh_t": wh.reshape(9 * hid, 4 * hid).T.astype(jnp.bfloat16)}


def init_forecaster_params(key, c_in, img_h, img_w):
    hw = img_h * img_w
    ks = jax.random.split(key, 5)
    stages = [
        # stage 1 (shallowest): rnn1 (in=16, hid=16), subnet1 = 3x3 leaky + 1x1
        {"rnn": _init_convlstm(ks[0], 16, 16, hw),
         "subnet": [_init_conv(ks[1], 3, 3, 16, 8, leaky=True),
                    _init_conv(ks[2], 1, 1, 8, c_in, leaky=False)]},
        # stage 2 (deepest): rnn2 (inputs=None, hid=32), subnet2 = 3x3 leaky
        {"rnn": _init_convlstm(ks[3], 32, 32, hw),
         "subnet": [_init_conv(ks[4], 3, 3, 32, 16, leaky=True)]},
    ]
    return {"stages": stages, "tap_masks": _make_tap_masks(img_h, img_w)}


# ---------------------------------------------------------------------------
# Plain-JAX reference (for a tolerance check of the Pallas implementation)
# ---------------------------------------------------------------------------

def _ref_conv_same(x, w, b):
    kh_n, kw_n, _, cout = w.shape
    h, wid = x.shape[1], x.shape[2]
    xp = jnp.pad(x, ((0, 0), (kh_n // 2, kh_n // 2), (kw_n // 2, kw_n // 2)))
    out = jnp.zeros((cout, h, wid), jnp.float32)
    for kh in range(kh_n):
        for kw in range(kw_n):
            out = out + jnp.einsum("chw,co->ohw",
                                   xp[:, kh:kh + h, kw:kw + wid], w[kh, kw])
    return out + b[:, None, None]


def _ref_lstm_step(rnn, x, h, c, img_h, img_w):
    hid = rnn["hid"]
    gates = _ref_conv_same(h, rnn["wh"], rnn["b_vec"])
    if x is not None:
        gates = gates + _ref_conv_same(
            x, rnn["wx"], jnp.zeros((4 * hid,), jnp.float32))
    peep = rnn["peep"].reshape(3, hid, img_h, img_w)
    i = jax.nn.sigmoid(gates[:hid] + peep[0] * c)
    f = jax.nn.sigmoid(gates[hid:2 * hid] + peep[1] * c)
    c_new = f * c + i * jnp.tanh(gates[2 * hid:3 * hid])
    o = jax.nn.sigmoid(gates[3 * hid:4 * hid] + peep[2] * c_new)
    return o * jnp.tanh(c_new), c_new


def forecaster_reference(params, hidden_states, seq_len, img_h, img_w):
    stages = params["stages"]
    B = hidden_states[0][0].shape[0]
    x_seq = None                                   # x_seq[s][b] -> (C, H, W)
    for idx in reversed(range(len(stages))):
        st = stages[idx]
        h0, c0 = hidden_states[idx]
        outs = [[None] * B for _ in range(seq_len)]
        for b in range(B):
            h, c = h0[b], c0[b]
            for s in range(seq_len):
                xin = None if x_seq is None else x_seq[s][b]
                h, c = _ref_lstm_step(st["rnn"], xin, h, c, img_h, img_w)
                y = h
                for layer in st["subnet"]:
                    y = _ref_conv_same(y, layer["w"], layer["b_vec"])
                    if layer["leaky"]:
                        y = jnp.where(y > 0, y, _LEAKY_SLOPE * y)
                outs[s][b] = y
        x_seq = outs
    return jnp.stack([jnp.stack([x_seq[s][b] for s in range(seq_len)])
                      for b in range(B)])


# ---------------------------------------------------------------------------
# Main
# ---------------------------------------------------------------------------

if __name__ == "__main__":
    B, C_IN, IMG_H, IMG_W = 2, 4, 16, 16
    SEQ_OUT = 10        # seq_len=10 hard-coded in Forecaster.forward_by_stage

    key = jax.random.PRNGKey(0)
    k_par, k_h1, k_c1, k_h2, k_c2 = jax.random.split(key, 5)
    params = init_forecaster_params(k_par, C_IN, IMG_H, IMG_W)
    # hidden_states as produced by the matching Encoder: (h, c) per stage, NCHW
    hidden_states = (
        (jax.random.normal(k_h1, (B, 16, IMG_H, IMG_W), jnp.float32),
         jax.random.normal(k_c1, (B, 16, IMG_H, IMG_W), jnp.float32)),
        (jax.random.normal(k_h2, (B, 32, IMG_H, IMG_W), jnp.float32),
         jax.random.normal(k_c2, (B, 32, IMG_H, IMG_W), jnp.float32)),
    )

    _roll_matches_jnp()     # resolve the rotate convention before tracing
    fold_b = _default_fold_batch()
    act_dt = _default_act_dtype()

    run = jax.jit(lambda hs: forecaster_forward(
        params, hs, SEQ_OUT, (IMG_H, IMG_W),
        fold_batch=fold_b, act_dtype=act_dt))
    out = jax.block_until_ready(run(hidden_states))

    assert out.shape == (B, SEQ_OUT, C_IN, IMG_H, IMG_W), out.shape
    assert bool(jnp.all(jnp.isfinite(out)))

    ref = forecaster_reference(params, hidden_states, SEQ_OUT, IMG_H, IMG_W)
    max_err = float(jnp.max(jnp.abs(out - ref)))
    mean_err = float(jnp.mean(jnp.abs(out - ref)))
    # tolerance widened vs an all-f32 check: kernels use bf16 matmul operands and
    # (on v6e/v7x) bf16 transcendentals, accumulated through two 10-step recurrences
    assert max_err < 1e-1, f"kernel vs reference mismatch: {max_err}"
    assert mean_err < 2e-2, f"kernel vs reference mean mismatch: {mean_err}"

    print("KERNEL_OK")
</pallas_src>

<mosaic_0001>
module attributes {stable_mosaic.version = 11 : i64} {
  func.func @kern(%arg0: memref<8x128xf32, #tpu.memory_space<vmem>>, %arg1: memref<8x128xf32, #tpu.memory_space<vmem>>) attributes {dimension_semantics = [], scalar_prefetch = 0 : i64, scratch_operands = 0 : i64, tpu.core_type = #tpu.core_type<tc>} {
    %c0 = arith.constant 0 : index
    %c0_0 = arith.constant 0 : index
    %0 = vector.load %arg0[%c0, %c0_0] : memref<8x128xf32, #tpu.memory_space<vmem>>, vector<8x128xf32>
    %c3_i32 = arith.constant 3 : i32
    %1 = tpu.dynamic_rotate %0 by %c3_i32 dim 1 : vector<8x128xf32>, i32 -> vector<8x128xf32>
    %c0_1 = arith.constant 0 : index
    %c0_2 = arith.constant 0 : index
    %2 = vector.load %arg1[%c0_1, %c0_2] : memref<8x128xf32, #tpu.memory_space<vmem>>, vector<8x128xf32>
    tpu.vector_store %arg1[%c0_1, %c0_2], %1 {strides = array<i32>} : memref<8x128xf32, #tpu.memory_space<vmem>>, vector<8x128xf32>,
    return
  }
}

</mosaic_0001>

<llo_original>
// kernel: tpu_custom_call.1
$region0: #{tpu_custom_call.1}
  #allocation0 [shape = 'u32[]', space=smem, size = 0x4, offset = 0x4, fixed_abs, tag = 'smem constant byte address 0x4 - core index']
  #allocation1 [shape = 'u32[144,128]{1,0:T(1,128)}', space=vmem, size = 0x12000, scoped, tag = 'internal scratch']
  %s0 = inlined_call_operand.hbm [shape: f32[8,128], index: 0, kind: input, shape index: {}]
  %s1 = inlined_call_operand.hbm [shape: f32[8,128], index: 1, kind: output, shape index: {}]
  %s2 = sld [smem:[#allocation0]]
  $region18: #{tpu_custom_call.1} parent=0
    _
  %s4 = ssub.s32 1, %s2
  %s5 = scalar_select 0, %s4, %s2
  $region1: #{tpu_custom_call.1} parent=0
    #allocation2 [shape = 'u8[4096]{0}', space=vmem, size = 0x1000, scoped, tag = 'input window, operand 0, single buffered']
    #allocation3 [shape = 's32[1]{0}', space=sflag, size = 0x4, scoped, tag = 'scoped memory for tpu_custom_call.1']
    #allocation4 [shape = 's32[1]{0}', space=sflag, size = 0x4, scoped, tag = 'scoped memory for tpu_custom_call.1']
    #allocation5 [shape = 'u8[4096]{0}', space=vmem, size = 0x1000, scoped, tag = 'output window, operand 0, single buffered']
    %6 = vsyncpa [#allocation3], 0
    %7 = vsyncpa [#allocation4], 0
    // Predicated region
    $region2: #{tpu_custom_call.1} parent=1 // pred_check
      _
    $region3: #{tpu_custom_call.1} parent=1 // pred_check_branch
      %9 = sbr.rel (0) target = $region5
    $region4: #{tpu_custom_call.1} parent=1 // pred_region
      %s11 = ssub.s32 128, 128
      %12 = vsyncadd [#allocation3], %s11
      %s14 = sshll.u32 [#allocation2], 4
      %s15 = int_to_ptr.vmem [resolvable:$true] %s14
      %17 = dma.hbm_to_vmem [thread:$0]  %s0, 128, %s15, [#allocation3]
    $region5: #{tpu_custom_call.1} parent=1 // pred_fallthru
      _
    // Predicated region
    $region6: #{tpu_custom_call.1} parent=1 // pred_check
      _
    $region7: #{tpu_custom_call.1} parent=1 // pred_check_branch
      %19 = sbr.rel (0) target = $region9
    $region8: #{tpu_custom_call.1} parent=1 // pred_region
      %20 = dma.done [#allocation3], 128
    $region9: #{tpu_custom_call.1} parent=1 // pred_fallthru
      _
    %v21 = vld [vmem:[#allocation2] sm:$0xff]
    %22 = vrot.lane.b32.xlu0 %v21, 3
    %v23 = vpop.permute.xlu0 %22
    %24 = vst [vmem:[#allocation5] sm:$0xff] %v23
    // Predicated region
    $region10: #{tpu_custom_call.1} parent=1 // pred_check
      _
    $region11: #{tpu_custom_call.1} parent=1 // pred_check_branch
      %26 = sbr.rel (0) target = $region13
    $region12: #{tpu_custom_call.1} parent=1 // pred_region
      %s28 = ssub.s32 128, 128
      %29 = vsyncadd [#allocation4], %s28
      %s31 = sshll.u32 [#allocation5], 4
      %s32 = int_to_ptr.vmem [resolvable:$true] %s31
      %34 = dma.vmem_to_hbm [thread:$0]  %s32, 128, %s1, [#allocation4]
    $region13: #{tpu_custom_call.1} parent=1 // pred_fallthru
      _
    // Predicated region
    $region14: #{tpu_custom_call.1} parent=1 // pred_check
      _
    $region15: #{tpu_custom_call.1} parent=1 // pred_check_branch
      %36 = sbr.rel (0) target = $region17
    $region16: #{tpu_custom_call.1} parent=1 // pred_region
      %37 = dma.done [#allocation4], 128
    $region17: #{tpu_custom_call.1} parent=1 // pred_fallthru
      _
    %38 = vsyncpa [#allocation3], 1
    %39 = vsyncpa [#allocation4], 1

</llo_original>
